<compile_context>
chip_gen: v6e
topology: v6e:2x2x1
jax: 0.10.0
libtpu: 0.0.40
codegen_flags: <defaults>
</compile_context>

<pallas_src>
import jax
import jax.numpy as jnp
from jax.experimental import pallas as pl
from jax.experimental.pallas import tpu as pltpu


_MIB = 1024 * 1024
# Generation-agnostic budgets: v7x has only 64 MiB physical VMEM per TC
# (~48 MiB safely usable); v5e/v6e have 128 MiB, so these are safe everywhere.
_VMEM_LIMIT_CAP = 48 * _MIB     # never ask the compiler for more than this
_RESIDENT_BUDGET = 40 * _MIB    # keep the whole HxH weight resident if it fits
_TILED_BUDGET = 24 * _MIB       # per-step footprint budget for the streamed path


# --------------------------------------------------------------------------- #
# Kernels
# --------------------------------------------------------------------------- #

def _resident_kernel(x_ref, w1_ref, b1_ref, w2_ref, b2_ref, o_ref):
    # x_ref : [TB, H]   CLS-token features
    # w1_ref: [H, H]    dense weight (in, out), resident in VMEM for the call
    # b1_ref: [1, H]    dense bias
    # w2_ref: [1, H]    out_proj weight as a row
    # b2_ref: [1, 1]    out_proj bias (SMEM scalar)
    # o_ref : [TB, 1]   regression output
    # Dropout is identity at inference time; no-op here.
    h = jnp.dot(x_ref[...], w1_ref[...], preferred_element_type=jnp.float32)
    h = jnp.tanh(h + b1_ref[...].astype(jnp.float32))
    # out_proj (output width 1): VPU multiply + lane reduction, not an N=1 matmul.
    out = jnp.sum(h * w2_ref[...].astype(jnp.float32), axis=-1, keepdims=True)
    o_ref[...] = (out + b2_ref[0, 0]).astype(o_ref.dtype)


def _tiled_kernel(x_ref, w1_ref, b1_ref, w2_ref, b2_ref, o_ref):
    # Streamed-weight fallback: reduce over TN-wide tiles of the dense output
    # dim. o_ref (f32, same block across the ni axis) doubles as the
    # accumulator, so no scratch buffer is needed.
    ni = pl.program_id(1)

    @pl.when(ni == 0)
    def _init():
        o_ref[...] = jnp.zeros_like(o_ref)

    h = jnp.dot(x_ref[...], w1_ref[...], preferred_element_type=jnp.float32)
    h = jnp.tanh(h + b1_ref[...].astype(jnp.float32))
    o_ref[...] += jnp.sum(h * w2_ref[...].astype(jnp.float32), axis=-1,
                          keepdims=True)

    @pl.when(ni == pl.num_programs(1) - 1)
    def _finalize():
        # out_proj bias added exactly once, at the end of the reduction.
        o_ref[...] += b2_ref[0, 0]


# --------------------------------------------------------------------------- #
# Wrapper / tiling heuristics
# --------------------------------------------------------------------------- #

def _round_up(x, m):
    return ((x + m - 1) // m) * m


def _pick_batch_tile(b_pad):
    # Largest MXU-friendly batch tile that still leaves a >1-extent "parallel"
    # axis (so the second TensorCore on v7x gets work).
    for t in (256, 128, 64, 32, 16, 8):
        if b_pad % t == 0 and b_pad // t >= 2:
            return t
    return b_pad


def _pick_tn(h, x_step_bytes, w_item, cap=None):
    # Biggest lane-aligned dense-output tile whose double-buffered footprint
    # fits the per-step budget (amortizes the ~0.35us grid-step overhead).
    for t in (2048, 1024, 512, 256, 128):
        if cap is not None and t > cap:
            continue
        if h % t != 0:
            continue
        need = x_step_bytes + 2 * (h * t + 2 * t) * w_item
        if need <= _TILED_BUDGET:
            return t
    return h


def regression_head(features, w_dense, b_dense, w_out, b_out, *,
                    weight_dtype=None, _force_tiled=False, _max_tile_n=None):
    """features: [B, S, H]. Weights stored [in, out]. Returns [B, 1] float32.

    weight_dtype: optional narrower streaming dtype for the big matrices
    (e.g. jnp.bfloat16) -- halves HBM traffic on this HBM-bound head; biases
    and accumulation stay float32.
    """
    B, S, H = features.shape

    if weight_dtype is not None:
        w_dense = w_dense.astype(weight_dtype)
        w_out = w_out.astype(weight_dtype)

    w_item = jnp.dtype(w_dense.dtype).itemsize
    x_item = jnp.dtype(features.dtype).itemsize

    b_dense_2d = b_dense.reshape(1, H).astype(jnp.float32)
    w_out_row = w_out.reshape(1, H)              # [H,1] column -> [1,H] row (pure reshape)
    b_out_2d = b_out.reshape(1, 1).astype(jnp.float32)

    # --- batch tiling: pad so the "parallel" axis has extent >= 2 (v7x has two
    # TensorCores); padding rows are tanh(bias)-garbage and get sliced off. ---
    if B % 8 == 0 and B >= 16:
        B_pad = B
        use_fused_cls = True                     # CLS slice fused into the BlockSpec
        x_arg = features                         # [B, S, H]
    else:
        B_pad = max(16, _round_up(B, 8))
        use_fused_cls = False
        x2d = features[:, 0, :]                  # tiny [B, H] slab
        if B_pad != B:
            x2d = jnp.pad(x2d, ((0, B_pad - B), (0, 0)))
        x_arg = x2d                              # [B_pad, H]

    TB = _pick_batch_tile(B_pad)
    n_b = B_pad // TB

    x_step_bytes = 2 * TB * H * x_item           # double-buffered x tile
    resident_need = (x_step_bytes
                     + 2 * (H * H + 2 * H) * w_item   # w1 + b1 + w2 (x2 buffers)
                     + 2 * TB * 4)                    # output tile
    use_resident = (not _force_tiled) and resident_need <= _RESIDENT_BUDGET

    # TODO(synk): for B in the thousands, emit a lane-dense (n_b, TB) output and
    # reshape in the wrapper to avoid masked last-dim-1 stores; irrelevant at the
    # small batch sizes this head targets.

    if use_resident:
        grid = (n_b,)
        if use_fused_cls:
            x_spec = pl.BlockSpec((TB, None, H), lambda bi: (bi, 0, 0))
        else:
            x_spec = pl.BlockSpec((TB, H), lambda bi: (bi, 0))
        in_specs = [
            x_spec,
            pl.BlockSpec((H, H), lambda bi: (0, 0)),     # whole weight resident
            pl.BlockSpec((1, H), lambda bi: (0, 0)),
            pl.BlockSpec((1, H), lambda bi: (0, 0)),
            pl.BlockSpec(memory_space=pltpu.MemorySpace.SMEM),
        ]
        out_spec = pl.BlockSpec((TB, 1), lambda bi: (bi, 0))
        kernel = _resident_kernel
        semantics = ("parallel",)
        vmem_need = resident_need
    else:
        TN = _pick_tn(H, x_step_bytes, w_item, cap=_max_tile_n)
        n_n = max(1, H // TN)
        grid = (n_b, n_n)
        if use_fused_cls:
            x_spec = pl.BlockSpec((TB, None, H), lambda bi, ni: (bi, 0, 0))
        else:
            x_spec = pl.BlockSpec((TB, H), lambda bi, ni: (bi, 0))
        in_specs = [
            x_spec,
            pl.BlockSpec((H, TN), lambda bi, ni: (0, ni)),
            pl.BlockSpec((1, TN), lambda bi, ni: (0, ni)),
            pl.BlockSpec((1, TN), lambda bi, ni: (0, ni)),
            pl.BlockSpec(memory_space=pltpu.MemorySpace.SMEM),
        ]
        # Same output block across the ni axis -> resident f32 accumulator target.
        out_spec = pl.BlockSpec((TB, 1), lambda bi, ni: (bi, 0))
        kernel = _tiled_kernel
        semantics = ("parallel", "arbitrary")
        vmem_need = x_step_bytes + 2 * (H * TN + 2 * TN) * w_item + 2 * TB * 4

    vmem_limit = int(min(max(vmem_need + 8 * _MIB, 16 * _MIB), _VMEM_LIMIT_CAP))

    out = pl.pallas_call(
        kernel,
        out_shape=jax.ShapeDtypeStruct((B_pad, 1), jnp.float32),
        grid_spec=pltpu.PrefetchScalarGridSpec(
            num_scalar_prefetch=0,
            grid=grid,
            in_specs=in_specs,
            out_specs=out_spec,
        ),
        compiler_params=pltpu.CompilerParams(
            dimension_semantics=semantics,
            vmem_limit_bytes=vmem_limit,
        ),
    )(x_arg, w_dense, b_dense_2d, w_out_row, b_out_2d)

    return out[:B]


# --------------------------------------------------------------------------- #
# Reference + tests
# --------------------------------------------------------------------------- #

def _reference(features, w_dense, b_dense, w_out, b_out):
    x = features[:, 0, :]
    h = jnp.tanh(x @ w_dense + b_dense)
    return h @ w_out + b_out


def _make_inputs(key, B, S, H):
    k_feat, k_w1, k_b1, k_w2, k_b2 = jax.random.split(key, 5)
    features = jax.random.normal(k_feat, (B, S, H), dtype=jnp.float32)
    w_dense = jax.random.normal(k_w1, (H, H), dtype=jnp.float32) * 0.05
    b_dense = jax.random.normal(k_b1, (H,), dtype=jnp.float32) * 0.05
    w_out = jax.random.normal(k_w2, (H, 1), dtype=jnp.float32) * 0.05
    b_out = jax.random.normal(k_b2, (1,), dtype=jnp.float32) * 0.05
    return features, w_dense, b_dense, w_out, b_out


if __name__ == "__main__":
    key = jax.random.PRNGKey(0)
    k1, k2, k3 = jax.random.split(key, 3)

    # 1) Small shape consistent with the module (resident-weight path, f32).
    f, w1, b1, w2, b2 = _make_inputs(k1, B=2, S=8, H=32)
    out = jax.block_until_ready(regression_head(f, w1, b1, w2, b2))
    ref = _reference(f, w1, b1, w2, b2)
    assert out.shape == (2, 1), out.shape
    assert jnp.allclose(out, ref, atol=1e-5, rtol=1e-4), (out, ref)

    # 2) bf16 weight streaming (halved HBM bytes); compared against a reference
    #    using the same bf16-cast weights so the tolerance stays meaningful.
    f, w1, b1, w2, b2 = _make_inputs(k2, B=4, S=8, H=256)
    out = jax.block_until_ready(
        regression_head(f, w1, b1, w2, b2, weight_dtype=jnp.bfloat16))
    ref = _reference(f,
                     w1.astype(jnp.bfloat16).astype(jnp.float32), b1,
                     w2.astype(jnp.bfloat16).astype(jnp.float32), b2)
    assert out.shape == (4, 1), out.shape
    assert jnp.allclose(out, ref, atol=5e-3, rtol=1e-2), (out, ref)

    # 3) Forced streamed-weight (tiled reduction) path with TN < H to exercise
    #    the in-place o_ref accumulation across the reduction axis.
    f, w1, b1, w2, b2 = _make_inputs(k3, B=4, S=8, H=256)
    out = jax.block_until_ready(
        regression_head(f, w1, b1, w2, b2, _force_tiled=True, _max_tile_n=128))
    ref = _reference(f, w1, b1, w2, b2)
    assert out.shape == (4, 1), out.shape
    assert jnp.allclose(out, ref, atol=1e-4, rtol=1e-4), (out, ref)

    print("KERNEL_OK")
</pallas_src>

<mosaic_0001>
module attributes {stable_mosaic.version = 11 : i64} {
  func.func @_resident_kernel(%arg0: i32, %arg1: memref<8x32xf32, #tpu.memory_space<vmem>>, %arg2: memref<32x32xf32, #tpu.memory_space<vmem>>, %arg3: memref<1x32xf32, #tpu.memory_space<vmem>>, %arg4: memref<1x32xf32, #tpu.memory_space<vmem>>, %arg5: memref<1x1xf32, #tpu.memory_space<smem>>, %arg6: memref<8x1xf32, #tpu.memory_space<vmem>>) attributes {dimension_semantics = [#tpu.dimension_semantics<parallel>], iteration_bounds = array<i64: 2>, scalar_prefetch = 0 : i64, scratch_operands = 0 : i64, tpu.core_type = #tpu.core_type<tc>, window_params = [{transform_indices = @transform_0, window_bounds = array<i64: 8, 32>}, {pipeline_mode = #tpu.pipeline_mode<synchronous>, transform_indices = @transform_1, window_bounds = array<i64: 32, 32>}, {pipeline_mode = #tpu.pipeline_mode<synchronous>, transform_indices = @transform_2, window_bounds = array<i64: 1, 32>}, {pipeline_mode = #tpu.pipeline_mode<synchronous>, transform_indices = @transform_3, window_bounds = array<i64: 1, 32>}, {transform_indices = @transform_4, window_bounds = array<i64: 1, 1>}, {transform_indices = @transform_5, window_bounds = array<i64: 8, 1>}]} {
    %c0 = arith.constant 0 : index
    %c0_0 = arith.constant 0 : index
    %0 = vector.load %arg1[%c0, %c0_0] : memref<8x32xf32, #tpu.memory_space<vmem>>, vector<8x32xf32>
    %c0_1 = arith.constant 0 : index
    %c0_2 = arith.constant 0 : index
    %1 = vector.load %arg2[%c0_1, %c0_2] : memref<32x32xf32, #tpu.memory_space<vmem>>, vector<32x32xf32>
    %cst = arith.constant dense<0.000000e+00> : vector<8x32xf32>
    %2 = tpu.matmul %0, %1, %cst {dimension_numbers = #tpu.dot_dimension_numbers<[1], [0], [0], [1], [0, 0, 1, 1], [], []>} : vector<8x32xf32>, vector<32x32xf32>, vector<8x32xf32> -> vector<8x32xf32>
    %c0_3 = arith.constant 0 : index
    %c0_4 = arith.constant 0 : index
    %3 = vector.load %arg3[%c0_3, %c0_4] : memref<1x32xf32, #tpu.memory_space<vmem>>, vector<1x32xf32>
    %4 = vector.broadcast %3 : vector<1x32xf32> to vector<8x32xf32>
    %5 = arith.addf %2, %4 : vector<8x32xf32>
    %6 = math.tanh %5 : vector<8x32xf32>
    %c0_5 = arith.constant 0 : index
    %c0_6 = arith.constant 0 : index
    %7 = vector.load %arg4[%c0_5, %c0_6] : memref<1x32xf32, #tpu.memory_space<vmem>>, vector<1x32xf32>
    %8 = vector.broadcast %7 : vector<1x32xf32> to vector<8x32xf32>
    %9 = arith.mulf %6, %8 : vector<8x32xf32>
    %cst_7 = arith.constant dense<0.000000e+00> : vector<8xf32>
    %10 = vector.multi_reduction <add>, %9, %cst_7 [1] : vector<8x32xf32> to vector<8xf32>
    %11 = vector.shape_cast %10 : vector<8xf32> to vector<8x1xf32>
    %c0_8 = arith.constant 0 : index
    %c0_9 = arith.constant 0 : index
    %12 = memref.load %arg5[%c0_8, %c0_9] : memref<1x1xf32, #tpu.memory_space<smem>>
    %13 = vector.broadcast %12 : f32 to vector<8x1xf32>
    %14 = arith.addf %11, %13 : vector<8x1xf32>
    %c0_10 = arith.constant 0 : index
    %c0_11 = arith.constant 0 : index
    %15 = vector.load %arg6[%c0_10, %c0_11] : memref<8x1xf32, #tpu.memory_space<vmem>>, vector<8x1xf32>
    tpu.vector_store %arg6[%c0_10, %c0_11], %14 {strides = array<i32>} : memref<8x1xf32, #tpu.memory_space<vmem>>, vector<8x1xf32>,
    return
  }
  func.func @transform_0(%arg0: i32) -> (i32, i32) {
    %c0_i32 = arith.constant 0 : i32
    %c0_i32_0 = arith.constant 0 : i32
    return %arg0, %c0_i32 : i32, i32
  }
  func.func @transform_1(%arg0: i32) -> (i32, i32) {
    %c0_i32 = arith.constant 0 : i32
    %c0_i32_0 = arith.constant 0 : i32
    %c0_i32_1 = arith.constant 0 : i32
    return %c0_i32, %c0_i32_0 : i32, i32
  }
  func.func @transform_2(%arg0: i32) -> (i32, i32) {
    %c0_i32 = arith.constant 0 : i32
    %c0_i32_0 = arith.constant 0 : i32
    %c0_i32_1 = arith.constant 0 : i32
    return %c0_i32, %c0_i32_0 : i32, i32
  }
  func.func @transform_3(%arg0: i32) -> (i32, i32) {
    %c0_i32 = arith.constant 0 : i32
    %c0_i32_0 = arith.constant 0 : i32
    %c0_i32_1 = arith.constant 0 : i32
    return %c0_i32, %c0_i32_0 : i32, i32
  }
  func.func @transform_4(%arg0: i32) -> (i32, i32) {
    %c0_i32 = arith.constant 0 : i32
    %c0_i32_0 = arith.constant 0 : i32
    %c0_i32_1 = arith.constant 0 : i32
    return %c0_i32, %c0_i32_0 : i32, i32
  }
  func.func @transform_5(%arg0: i32) -> (i32, i32) {
    %c0_i32 = arith.constant 0 : i32
    %c0_i32_0 = arith.constant 0 : i32
    return %arg0, %c0_i32 : i32, i32
  }
}

</mosaic_0001>

<llo_original>
// kernel: tpu_custom_call.1
$region0: #{tpu_custom_call.1}
  #allocation0 [shape = 'u32[]', space=smem, size = 0x4, offset = 0x4, fixed_abs, tag = 'smem constant byte address 0x4 - core index']
  #allocation1 [shape = 'u32[144,128]{1,0:T(1,128)}', space=vmem, size = 0x12000, scoped, tag = 'internal scratch']
  #allocation2 [shape = 'f32[1,1]{1,0:T(1,128)S(6)}', space=smem, size = 0x200, scoped, tag = 'scoped memory for tpu_custom_call.1']
  %s0 = inlined_call_operand.hbm [shape: f32[16,32], index: 0, kind: input, shape index: {}]
  %s1 = inlined_call_operand.hbm [shape: f32[32,32], index: 1, kind: input, shape index: {}]
  %s2 = inlined_call_operand.vmem [shape: f32[1,32], index: 2, kind: input, shape index: {}]
  %s3 = inlined_call_operand.vmem [shape: f32[1,32], index: 3, kind: input, shape index: {}]
  %s4 = inlined_call_operand.<no memory space> [shape: f32[1,1], index: 4, kind: input, shape index: {}]
  %s5 = inlined_call_operand.vmem [shape: f32[16,1], index: 5, kind: output, shape index: {}]
  %s6 = sld [smem:[#allocation0]]
  $region61: #{tpu_custom_call.1} parent=0
    _
  %s8 = ssub.s32 1, %s6
  %s9 = scalar_select 0, %s8, %s6
  %10 = sst [smem:[#allocation2]] %s4
  $region1: #{tpu_custom_call.1} parent=0
    #allocation3 [shape = 'u8[8192]{0}', space=vmem, size = 0x2000, scoped, tag = 'input window, operand 0']
    #allocation4 [shape = 's32[2]{0}', space=sflag, size = 0x8, scoped, tag = 'scoped memory for tpu_custom_call.1']
    #allocation5 [shape = 'u8[16384]{0}', space=vmem, size = 0x4000, scoped, tag = 'input window, operand 1, single buffered']
    #allocation6 [shape = 's32[1]{0}', space=sflag, size = 0x4, scoped, tag = 'scoped memory for tpu_custom_call.1']
    %11 = vsyncpa [#allocation4], 0
    %s12 = scalar_lea.sflag [#allocation4], 1
    %13 = vsyncpa %s12, 0
    %14 = vsyncpa [#allocation6], 0
    loop: start=0, step=1, limit=4
    $region2: #{tpu_custom_call.1} parent=1 // loop_pre_header
      _
    $region3: #{tpu_custom_call.1} parent=1 // loop_header
      %s16 = sphi 0, %s20
      %p17 = scmp.ge.s32.totalorder %s16, 4
      %s26 = sphi 0, %s28
      %s29 = sphi 0, %s26
      %s30 = sphi 0, %s29
      %s46 = sphi 0, %s30
      %s50 = sphi 0, %s50
      %s52 = sphi 0, %s50
      %s53 = sphi 0, %s52
      %s67 = sphi 0, %s53
      %s71 = sphi 0, %s71
      %s73 = sphi 0, %s71
      %s74 = sphi 0, %s73
      %s88 = sphi 0, %s74
      %s92 = sphi 0, %s92
      %s94 = sphi 0, %s92
      %s95 = sphi 0, %s94
      %s109 = sphi 0, %s95
      %s113 = sphi 0, %s113
      %s115 = sphi 0, %s113
      %s116 = sphi 0, %s115
      %s130 = sphi 0, %s116
      %s136 = sphi 0, %s138
      %s139 = sphi 0, %s136
      %s140 = sphi 0, %s139
      %s156 = sphi 0, %s140
    $region4: #{tpu_custom_call.1} parent=1 // loop_header_branch
      %19 = sbr.rel (%p17) target = $region8
    $region5: #{tpu_custom_call.1} parent=1 // loop_body
      %s21 = ssub.s32 %s16, 1
      %s22 = ssub.s32 %s16, 2
      %s23 = sadd.s32 %s16, 1
      %s24 = ssub.s32 %s16, %s23
      %p25 = scmp.eq.s32.totalorder %s24, 0
      %s27 = sadd.s32 %s26, 1
      %s28 = scalar_select %p25, %s26, %s27
      %p31 = pneg %p25
      %p32 = scmp.eq.s32.totalorder %s16, 1
      %p33 = por %p31, %p32
      %p34 = scmp.ne.s32.totalorder %s26, %s29
      %p35 = scmp.eq.s32.totalorder %s16, 0
      %p36 = por %p34, %p35
      %p37 = scmp.ne.s32.totalorder %s26, %s29
      %p38 = scmp.eq.s32.totalorder %s21, 1
      %p39 = por %p37, %p38
      %p40 = scmp.ne.s32.totalorder %s29, %s30
      %p41 = scmp.eq.s32.totalorder %s21, 0
      %p42 = por %p40, %p41
      %p43 = scmp.ne.s32.totalorder %s29, %s30
      %p44 = scmp.eq.s32.totalorder %s22, 1
      %p45 = por %p43, %p44
      %p47 = scmp.ne.s32.totalorder %s30, %s46
      %p48 = scmp.eq.s32.totalorder %s22, 0
      %p49 = por %p47, %p48
      %s51 = sadd.s32 %s50, 1
      %p54 = scmp.eq.s32.totalorder %s16, 1
      %p55 = scmp.ne.s32.totalorder %s50, %s52
      %p56 = scmp.eq.s32.totalorder %s16, 0
      %p57 = por %p55, %p56
      %p58 = scmp.ne.s32.totalorder %s50, %s52
      %p59 = scmp.eq.s32.totalorder %s21, 1
      %p60 = por %p58, %p59
      %p61 = scmp.ne.s32.totalorder %s52, %s53
      %p62 = scmp.eq.s32.totalorder %s21, 0
      %p63 = por %p61, %p62
      %p64 = scmp.ne.s32.totalorder %s52, %s53
      %p65 = scmp.eq.s32.totalorder %s22, 1
      %p66 = por %p64, %p65
      %p68 = scmp.ne.s32.totalorder %s53, %s67
      %p69 = scmp.eq.s32.totalorder %s22, 0
      %p70 = por %p68, %p69
      %s72 = sadd.s32 %s71, 1
      %p75 = scmp.eq.s32.totalorder %s16, 1
      %p76 = scmp.ne.s32.totalorder %s71, %s73
      %p77 = scmp.eq.s32.totalorder %s16, 0
      %p78 = por %p76, %p77
      %p79 = scmp.ne.s32.totalorder %s71, %s73
      %p80 = scmp.eq.s32.totalorder %s21, 1
      %p81 = por %p79, %p80
      %p82 = scmp.ne.s32.totalorder %s73, %s74
      %p83 = scmp.eq.s32.totalorder %s21, 0
      %p84 = por %p82, %p83
      %p85 = scmp.ne.s32.totalorder %s73, %s74
      %p86 = scmp.eq.s32.totalorder %s22, 1
      %p87 = por %p85, %p86
      %p89 = scmp.ne.s32.totalorder %s74, %s88
      %p90 = scmp.eq.s32.totalorder %s22, 0
      %p91 = por %p89, %p90
      %s93 = sadd.s32 %s92, 1
      %p96 = scmp.eq.s32.totalorder %s16, 1
      %p97 = scmp.ne.s32.totalorder %s92, %s94
      %p98 = scmp.eq.s32.totalorder %s16, 0
      %p99 = por %p97, %p98
      %p100 = scmp.ne.s32.totalorder %s92, %s94
      %p101 = scmp.eq.s32.totalorder %s21, 1
      %p102 = por %p100, %p101
      %p103 = scmp.ne.s32.totalorder %s94, %s95
      %p104 = scmp.eq.s32.totalorder %s21, 0
      %p105 = por %p103, %p104
      %p106 = scmp.ne.s32.totalorder %s94, %s95
      %p107 = scmp.eq.s32.totalorder %s22, 1
      %p108 = por %p106, %p107
      %p110 = scmp.ne.s32.totalorder %s95, %s109
      %p111 = scmp.eq.s32.totalorder %s22, 0
      %p112 = por %p110, %p111
      %s114 = sadd.s32 %s113, 1
      %p117 = scmp.eq.s32.totalorder %s16, 1
      %p118 = scmp.ne.s32.totalorder %s113, %s115
      %p119 = scmp.eq.s32.totalorder %s16, 0
      %p120 = por %p118, %p119
      %p121 = scmp.ne.s32.totalorder %s113, %s115
      %p122 = scmp.eq.s32.totalorder %s21, 1
      %p123 = por %p121, %p122
      %p124 = scmp.ne.s32.totalorder %s115, %s116
      %p125 = scmp.eq.s32.totalorder %s21, 0
      %p126 = por %p124, %p125
      %p127 = scmp.ne.s32.totalorder %s115, %s116
      %p128 = scmp.eq.s32.totalorder %s22, 1
      %p129 = por %p127, %p128
      %p131 = scmp.ne.s32.totalorder %s116, %s130
      %p132 = scmp.eq.s32.totalorder %s22, 0
      %p133 = por %p131, %p132
      %s134 = ssub.s32 %s16, %s23
      %p135 = scmp.eq.s32.totalorder %s134, 0
      %s137 = sadd.s32 %s136, 1
      %s138 = scalar_select %p135, %s136, %s137
      %p141 = pneg %p135
      %p142 = scmp.eq.s32.totalorder %s16, 1
      %p143 = por %p141, %p142
      %p144 = scmp.ne.s32.totalorder %s136, %s139
      %p145 = scmp.eq.s32.totalorder %s16, 0
      %p146 = por %p144, %p145
      %p147 = scmp.ne.s32.totalorder %s136, %s139
      %p148 = scmp.eq.s32.totalorder %s21, 1
      %p149 = por %p147, %p148
      %p150 = scmp.ne.s32.totalorder %s139, %s140
      %p151 = scmp.eq.s32.totalorder %s21, 0
      %p152 = por %p150, %p151
      %p153 = scmp.ne.s32.totalorder %s139, %s140
      %p154 = scmp.eq.s32.totalorder %s22, 1
      %p155 = por %p153, %p154
      %p157 = scmp.ne.s32.totalorder %s140, %s156
      %p158 = scmp.eq.s32.totalorder %s22, 0
      %p159 = por %p157, %p158
      %p160 = scmp.le.s32.totalorder 1, %s16
      %p161 = scmp.lt.s32.totalorder %s16, 3
      %p162 = pnand %p160, %p161
      %p163 = pneg %p162
      // Predicated region
      $region9: #{tpu_custom_call.1} parent=5 // pred_check
        _
      $region10: #{tpu_custom_call.1} parent=5 // pred_check_branch
        %165 = sbr.rel (%p162) target = $region12
      $region11: #{tpu_custom_call.1} parent=5 // pred_region
        %s166 = ssub.s32 %s16, 1
        // Predicated region
        $region13: #{tpu_custom_call.1} parent=11 // pred_check
          %p167 = pneg %p63
        $region14: #{tpu_custom_call.1} parent=11 // pred_check_branch
          %169 = sbr.rel (%p167) target = $region16
        $region15: #{tpu_custom_call.1} parent=11 // pred_region
          %s171 = ssub.s32 512, 512
          %172 = vsyncadd [#allocation6], %s171
          %s173 = sshll.u32 [#allocation5], 4
          %s174 = int_to_ptr.vmem [resolvable:$true] %s173
          %179 = dma.hbm_to_vmem [thread:$0]  %s1, 512, %s174, [#allocation6], 128, 128, 8
        $region16: #{tpu_custom_call.1} parent=11 // pred_fallthru
          _
        // Predicated region
        $region17: #{tpu_custom_call.1} parent=11 // pred_check
          %p180 = pneg %p84
        $region18: #{tpu_custom_call.1} parent=11 // pred_check_branch
          %182 = sbr.rel (%p180) target = $region20
        $region19: #{tpu_custom_call.1} parent=11 // pred_region
          _
        $region20: #{tpu_custom_call.1} parent=11 // pred_fallthru
          _
        // Predicated region
        $region21: #{tpu_custom_call.1} parent=11 // pred_check
          %p183 = pneg %p105
        $region22: #{tpu_custom_call.1} parent=11 // pred_check_branch
          %185 = sbr.rel (%p183) target = $region24
        $region23: #{tpu_custom_call.1} parent=11 // pred_region
          _
        $region24: #{tpu_custom_call.1} parent=11 // pred_fallthru
          _
        // Predicated region
        $region25: #{tpu_custom_call.1} parent=11 // pred_check
          %p186 = pneg %p126
        $region26: #{tpu_custom_call.1} parent=11 // pred_check_branch
          %188 = sbr.rel (%p186) target = $region28
        $region27: #{tpu_custom_call.1} parent=11 // pred_region
          _
        $region28: #{tpu_custom_call.1} parent=11 // pred_fallthru
          _
      $region12: #{tpu_custom_call.1} parent=5 // pred_fallthru
        _
      %p189 = scmp.lt.s32.totalorder %s16, 2
      // Predicated region
      $region29: #{tpu_custom_call.1} parent=5 // pred_check
        %p190 = pneg %p189
      $region30: #{tpu_custom_call.1} parent=5 // pred_check_branch
        %192 = sbr.rel (%p190) target = $region32
      $region31: #{tpu_custom_call.1} parent=5 // pred_region
        // Predicated region
        $region33: #{tpu_custom_call.1} parent=31 // pred_check
          %p193 = pneg %p36
        $region34: #{tpu_custom_call.1} parent=31 // pred_check_branch
          %195 = sbr.rel (%p193) target = $region36
        $region35: #{tpu_custom_call.1} parent=31 // pred_region
          %s196 = sand.u32 %s26, 1
          %s197 = scalar_lea.sflag [#allocation4], %s196
          %s198 = sand.u32 %s26, 1
          %s199 = smul.addr %s198, 8
          %s200 = scalar_lea.vmem [#allocation3], %s199
          %s202 = ssub.s32 128, 128
          %203 = vsyncadd %s197, %s202
          %s204 = smul.addr %s16, 128
          %s205 = scalar_lea.hbm %s0, %s204
          %s207 = sshll.u32 %s200, 4
          %s208 = int_to_ptr.vmem [resolvable:$true] %s207
          %210 = dma.hbm_to_vmem [thread:$0]  %s205, 128, %s208, %s197
        $region36: #{tpu_custom_call.1} parent=31 // pred_fallthru
          _
      $region32: #{tpu_custom_call.1} parent=5 // pred_fallthru
        _
      %p211 = scmp.le.s32.totalorder 1, %s16
      %p212 = scmp.lt.s32.totalorder %s16, 3
      %p213 = pnand %p211, %p212
      %p214 = pneg %p213
      // Predicated region
      $region37: #{tpu_custom_call.1} parent=5 // pred_check
        _
      $region38: #{tpu_custom_call.1} parent=5 // pred_check_branch
        %216 = sbr.rel (%p213) target = $region40
      $region39: #{tpu_custom_call.1} parent=5 // pred_region
        %s217 = ssub.s32 %s16, 1
        %s218 = sand.u32 %s29, 1
        %s219 = scalar_lea.sflag [#allocation4], %s218
        %s220 = sand.u32 %s29, 1
        %s221 = smul.addr %s220, 8
        %s222 = scalar_lea.vmem [#allocation3], %s221
        // Predicated region
        $region41: #{tpu_custom_call.1} parent=39 // pred_check
          %p223 = pneg %p42
        $region42: #{tpu_custom_call.1} parent=39 // pred_check_branch
          %225 = sbr.rel (%p223) target = $region44
        $region43: #{tpu_custom_call.1} parent=39 // pred_region
          %226 = dma.done %s219, 128
        $region44: #{tpu_custom_call.1} parent=39 // pred_fallthru
          _
        // Predicated region
        $region45: #{tpu_custom_call.1} parent=39 // pred_check
          %p227 = pneg %p63
        $region46: #{tpu_custom_call.1} parent=39 // pred_check_branch
          %229 = sbr.rel (%p227) target = $region48
        $region47: #{tpu_custom_call.1} parent=39 // pred_region
          %230 = dma.done [#allocation6], 512
        $region48: #{tpu_custom_call.1} parent=39 // pred_fallthru
          _
        %s231 = sand.u32 %s29, 1
        %s232 = scalar_lea.sflag [#allocation4], %s231
        %s233 = sand.u32 %s29, 1
        %s234 = smul.addr %s233, 8
        %s235 = scalar_lea.vmem [#allocation3], %s234
        %p236 = pneg %p42
        %p237 = pneg %p39
        %p238 = pneg %p63
        %p239 = pneg %p60
        %p240 = pneg %p84
        %p241 = pneg %p81
        %p242 = pneg %p105
        %p243 = pneg %p102
        %p244 = pneg %p126
        %p245 = pneg %p123
        %p246 = pneg %p152
        %p247 = pneg %p149
        %p248 = scmp.lt.s32.totalorder %s21, 1
        %s249 = scalar_select %p248, %s21, 1
        %s250 = smul.addr %s249, 8
        %s251 = scalar_lea.vmem %s5, %s250
        %p252 = scmp.lt.s32.totalorder %s21, 1
        %s253 = scalar_select %p252, %s21, 1
        %s254 = smul.addr %s253, 8
        %s255 = scalar_lea.vmem %s5, %s254
        %v256 = vld [vmem:[%s222] sm:$0xff]
        %v257 = vld [vmem:[#allocation5] sm:$0xff]
        %v258 = vld [vmem:[#allocation5 + $0x8] sm:$0xff]
        %v259 = vld [vmem:[#allocation5 + $0x10] sm:$0xff]
        %v260 = vld [vmem:[#allocation5 + $0x18] sm:$0xff]
        %v261 = vld [vmem:[%s2] sm:$0x1]
        %v263 = vlaneseq
        %v264 = vshrl.u32 %v263, 7
        %v265 = vsub.s32 0, %v264
        %v266 = vrot.slane %v261, %v265
        %vm268 = vcmask 261120
        %v270 = vsel %vm268, %v256, 0
        %272 = vmatprep.subr.mxu0 0.0
        %273 = vmatpush1.msra.mxu0 0.0
        %274 = vmatprep.subr.mxu0 0.0
        %275 = vmatpush1.msra.mxu0 0.0
        %276 = vmatprep.subr.mxu0 0.0
        %277 = vmatpush1.msra.mxu0 0.0
        %278 = vmatprep.subr.mxu0 0.0
        %279 = vmatpush1.msra.mxu0 0.0
        %280 = vmatprep.subr.mxu0 0.0
        %281 = vmatpush1.msra.mxu0 0.0
        %282 = vmatprep.subr.mxu0 0.0
        %283 = vmatpush1.msra.mxu0 0.0
        %284 = vmatprep.subr.mxu0 0.0
        %285 = vmatpush1.msra.mxu0 0.0
        %286 = vmatprep.subr.mxu0 0.0
        %287 = vmatpush1.msra.mxu0 0.0
        %288 = vmatprep.subr.mxu0 0.0
        %289 = vmatpush1.msra.mxu0 0.0
        %290 = vmatprep.subr.mxu0 0.0
        %291 = vmatpush1.msra.mxu0 0.0
        %292 = vmatprep.subr.mxu0 0.0
        %293 = vmatpush1.msra.mxu0 0.0
        %294 = vmatprep.subr.mxu0 0.0
        %295 = vmatpush1.msra.mxu0 0.0
        %296 = vmatprep.subr.mxu0 0.0
        %297 = vmatpush1.msra.mxu0 %v260
        %298 = vmatprep.subr.mxu0 0.0
        %299 = vmatpush1.msra.mxu0 %v259
        %300 = vmatprep.subr.mxu0 0.0
        %301 = vmatpush1.msra.mxu0 %v258
        %302 = vmatprep.subr.mxu0 0.0
        %303 = vmatpush1.msra.mxu0 %v257
        %304 = vmatprep.subr.mxu0 0.0
        %305 = vmatpush2.msra.mxu0 0.0
        %306 = vmatprep.subr.mxu0 0.0
        %307 = vmatpush2.msra.mxu0 0.0
        %308 = vmatprep.subr.mxu0 0.0
        %309 = vmatpush2.msra.mxu0 0.0
        %310 = vmatprep.subr.mxu0 0.0
        %311 = vmatpush2.msra.mxu0 0.0
        %312 = vmatprep.subr.mxu0 0.0
        %313 = vmatpush2.msra.mxu0 0.0
        %314 = vmatprep.subr.mxu0 0.0
        %315 = vmatpush2.msra.mxu0 0.0
        %316 = vmatprep.subr.mxu0 0.0
        %317 = vmatpush2.msra.mxu0 0.0
        %318 = vmatprep.subr.mxu0 0.0
        %319 = vmatpush2.msra.mxu0 0.0
        %320 = vmatprep.subr.mxu0 0.0
        %321 = vmatpush2.msra.mxu0 0.0
        %322 = vmatprep.subr.mxu0 0.0
        %323 = vmatpush2.msra.mxu0 0.0
        %324 = vmatprep.subr.mxu0 0.0
        %325 = vmatpush2.msra.mxu0 0.0
        %326 = vmatprep.subr.mxu0 0.0
        %327 = vmatpush2.msra.mxu0 0.0
        %328 = vmatprep.subr.mxu0 0.0
        %329 = vmatpush2.msra.mxu0 0.0
        %330 = vmatprep.subr.mxu0 0.0
        %331 = vmatpush2.msra.mxu0 0.0
        %332 = vmatprep.subr.mxu0 0.0
        %333 = vmatpush2.msra.mxu0 0.0
        %334 = vmatprep.subr.mxu0 0.0
        %335 = vmatpush2.msra.mxu0 0.0
        %336 = vmatprep.mubr.f32.mxu0 0.0
        %337 = vmatmul.mubr.f32.gmra.mxu0 %v270
        %v338 = vpop.f32.mrf.mxu0
        %v339 = vadd.f32 %v266, %v338
        %v340 = vpop.f32.mrf.mxu0
        %341 = vdwg.mxu0
        %v342 = vtanh.pop %v339
        %v343 = vld [vmem:[%s3] sm:$0x1]
        %v345 = vlaneseq
        %v346 = vshrl.u32 %v345, 7
        %v347 = vsub.s32 0, %v346
        %v348 = vrot.slane %v343, %v347
        %v350 = vmul.f32 %v342, %v348
        %v351 = vsel %vm268, %v350, 0.0
        %352 = vadd.xlane.f32.xlu0 %v351
        %v353 = vpop.xlane.xlu0 %352
        %s354 = sld [smem:[#allocation2]]
        %v355 = vstv %s354
        %v356 = vadd.f32 %v353, %v355
        %vm357 = vcmask 7168
        %358 = vst.msk [vmem:[%s255] sm:$0xff] %vm357, %v356
        %p359 = scmp.lt.s32.totalorder %s21, 1
        %s360 = scalar_select %p359, %s21, 1
        %s361 = smul.addr %s360, 8
        %s362 = scalar_lea.vmem %s5, %s361
        // Predicated region
        $region49: #{tpu_custom_call.1} parent=39 // pred_check
          %p363 = pneg %p149
        $region50: #{tpu_custom_call.1} parent=39 // pred_check_branch
          %365 = sbr.rel (%p363) target = $region52
        $region51: #{tpu_custom_call.1} parent=39 // pred_region
          _
        $region52: #{tpu_custom_call.1} parent=39 // pred_fallthru
          _
      $region40: #{tpu_custom_call.1} parent=5 // pred_fallthru
        _
      %p366 = scmp.le.s32.totalorder 2, %s16
      // Predicated region
      $region53: #{tpu_custom_call.1} parent=5 // pred_check
        %p367 = pneg %p366
      $region54: #{tpu_custom_call.1} parent=5 // pred_check_branch
        %369 = sbr.rel (%p367) target = $region56
      $region55: #{tpu_custom_call.1} parent=5 // pred_region
        %s370 = ssub.s32 %s16, 2
        // Predicated region
        $region57: #{tpu_custom_call.1} parent=55 // pred_check
          %p371 = pneg %p155
        $region58: #{tpu_custom_call.1} parent=55 // pred_check_branch
          %373 = sbr.rel (%p371) target = $region60
        $region59: #{tpu_custom_call.1} parent=55 // pred_region
          %p374 = scmp.lt.s32.totalorder %s22, 1
          %s375 = scalar_select %p374, %s22, 1
          %s376 = smul.addr %s375, 8
          %s377 = scalar_lea.vmem %s5, %s376
        $region60: #{tpu_custom_call.1} parent=55 // pred_fallthru
          _
      $region56: #{tpu_custom_call.1} parent=5 // pred_fallthru
        _
    $region6: #{tpu_custom_call.1} parent=1 // loop_footer
      %s20 = sadd.s32 1, %s16
    $region7: #{tpu_custom_call.1} parent=1 // loop_footer_branch
      %15 = sbr.rel target = $region3
    $region8: #{tpu_custom_call.1} parent=1 // loop_exit
      _
    %378 = vsyncpa [#allocation4], 1
    %s379 = scalar_lea.sflag [#allocation4], 1
    %380 = vsyncpa %s379, 1
    %381 = vsyncpa [#allocation6], 1

</llo_original>
